<compile_context>
chip_gen: v7x
topology: tpu7x:2x2x1
jax: 0.10.0
libtpu: 0.0.40
codegen_flags: <defaults>
</compile_context>

<pallas_src>
import functools

import numpy as np
import jax
import jax.numpy as jnp
from jax.experimental import pallas as pl
from jax.experimental.pallas import tpu as pltpu


# ---------------------------------------------------------------------------
# Deterministic "parameters" (the k/l frequency buffers from GetKL)
# ---------------------------------------------------------------------------
def get_kl(inP):
    half = inP // 2
    k1 = -np.arange(0, half, dtype=np.float32)
    k2 = -np.arange(1, half, dtype=np.float32)
    l1 = -np.arange(0, half, dtype=np.float32)
    l2 = np.arange(1, half, dtype=np.float32)
    k1 = np.concatenate([k1, -np.ones(1, np.float32) / 2])
    k2 = np.concatenate([k2, -np.ones(1, np.float32) / 2])
    l1 = np.concatenate([l1, -np.ones(1, np.float32) / 2])
    l2 = np.concatenate([l2, np.ones(1, np.float32) / 2])
    v = np.float32(np.pi / inP * (inP - 1))
    return k1 * v, k2 * v, l1 * v, l2 * v


def get_basis_tables(inP):
    """Per-basis-element (k, l, phase) tables; phase folds sin into cos."""
    k1, k2, l1, l2 = get_kl(inP)
    n1, n2 = k1.shape[0], k2.shape[0]          # inP//2 + 1, inP//2
    # Block order and flattening match torch:
    #   cos(k1*X + l1*Y) -> (n1, n1), cos(k2*X + l2*Y) -> (n2, n2),
    #   sin(k1*X + l2*Y) -> (n1, n2), sin(k2*X + l1*Y) -> (n2, n1)
    b1k, b1l = np.repeat(k1, n1), np.tile(l1, n1)
    b2k, b2l = np.repeat(k2, n2), np.tile(l2, n2)
    b3k, b3l = np.repeat(k1, n2), np.tile(l2, n1)
    b4k, b4l = np.repeat(k2, n1), np.tile(l1, n2)
    kvec = np.concatenate([b1k, b2k, b3k, b4k]).astype(np.float32)
    lvec = np.concatenate([b1l, b2l, b3l, b4l]).astype(np.float32)
    phase = np.concatenate(
        [np.zeros(n1 * n1 + n2 * n2, np.float32),
         np.full(n1 * n2 + n2 * n1, np.float32(np.pi / 2), np.float32)])
    P = inP * inP
    assert kvec.shape[0] == P
    return kvec.reshape(P, 1), lvec.reshape(P, 1), phase.reshape(P, 1)


def _round_up(a, m):
    return (a + m - 1) // m * m


# ---------------------------------------------------------------------------
# Pallas forward: transposed lane-dense layout, one streamed input per tile
# ---------------------------------------------------------------------------
def f_fun_forward(x, out_dim, inP=5, tile_b=2048):
    P = inP * inP
    F = P * out_dim                # 200 for (inP=5, out_dim=8)
    D = F + 5 + 2                  # 207

    shape = x.shape[:-1]
    x2 = x.reshape(-1, x.shape[-1]).astype(jnp.float32)
    assert x2.shape[-1] == D, (x2.shape, D)
    B = x2.shape[0]

    # Lane-aligned tile of batch rows; pad B up to a multiple of the tile.
    tb = max(128, min(_round_up(tile_b, 128), _round_up(B, 128)))
    Bp = _round_up(B, tb)

    # Single transposed input stream: batch rows on the 128-lane axis.
    xt = jnp.pad(x2, ((0, Bp - B), (0, 0))).T            # (D, Bp)

    kvec, lvec, pvec = get_basis_tables(inP)
    tbl = jnp.asarray(np.concatenate([kvec, lvec, pvec], axis=1))   # (P, 3)

    def kernel(tbl_ref, x_ref, o_ref):
        # tbl_ref: (P, 3) frequency/phase table (tiny, constant across grid)
        # x_ref  : (D, TB) transposed rows; rows = features/scalars, lanes = batch
        # o_ref  : (out_dim, TB) lane-dense output block
        k = tbl_ref[:, 0:1]                    # (P, 1)
        l = tbl_ref[:, 1:2]
        ph = tbl_ref[:, 2:3]

        theta = x_ref[F + 0:F + 1, :]          # (1, TB) lane-dense scalars
        sx = x_ref[F + 1:F + 2, :]
        sy = x_ref[F + 2:F + 3, :]
        tx = x_ref[F + 3:F + 4, :]
        ty = x_ref[F + 4:F + 5, :]
        cx = x_ref[F + 5:F + 6, :]
        cy = x_ref[F + 6:F + 7, :]

        x0 = cx * 0.5 + tx                     # /2 of the raw coords, in-kernel
        y0 = cy * 0.5 + ty
        ct = jnp.cos(theta)
        st = jnp.sin(theta)
        xr = ct * x0 - st * y0
        yr = st * xr + ct * y0                 # torch rebinding: Y uses rotated X
        X = (sx + 1.0) * xr                    # (1, TB)
        Y = (sy + 1.0) * yr                    # (1, TB)

        # Lane-dense basis; sin rows folded into a single cos via phase shift.
        basis = jnp.cos(k * X + l * Y - ph)    # (P, TB)

        acc = jnp.zeros(o_ref.shape, jnp.float32)          # (out_dim, TB)
        for j in range(P):
            acc = acc + (x_ref[j * out_dim:(j + 1) * out_dim, :]
                         * basis[j:j + 1, :])
        o_ref[...] = acc

    out_t = pl.pallas_call(
        kernel,
        out_shape=jax.ShapeDtypeStruct((out_dim, Bp), jnp.float32),
        grid=(Bp // tb,),
        in_specs=[
            pl.BlockSpec((P, 3), lambda i: (0, 0)),
            pl.BlockSpec((D, tb), lambda i: (0, i)),
        ],
        out_specs=pl.BlockSpec((out_dim, tb), lambda i: (0, i)),
        compiler_params=pltpu.CompilerParams(
            dimension_semantics=("parallel",)),
    )(tbl, xt)

    out = out_t[:, :B].T                       # (B, out_dim)
    return out.reshape(*shape, out_dim)


# ---------------------------------------------------------------------------
# Pure-JAX reference (mirrors the torch code line by line, incl. the X rebind)
# ---------------------------------------------------------------------------
def f_fun_reference(x, out_dim, inP=5):
    k1, k2, l1, l2 = get_kl(inP)
    k1 = jnp.asarray(k1).reshape(1, inP // 2 + 1, 1)
    l1 = jnp.asarray(l1).reshape(1, 1, inP // 2 + 1)
    k2 = jnp.asarray(k2).reshape(1, inP // 2, 1)
    l2 = jnp.asarray(l2).reshape(1, 1, inP // 2)

    shape = x.shape[:-1]
    x2 = x.reshape(-1, x.shape[-1]).astype(jnp.float32)
    coords = x2[:, -2:] / 2.0
    featall = x2[:, :-2]
    B = featall.shape[0]
    fpar = featall[:, -5:]
    feat = featall[:, :-5].reshape(B, inP * inP, out_dim)

    X = coords[:, 0] + fpar[:, 3]
    Y = coords[:, 1] + fpar[:, 4]
    X = jnp.cos(fpar[:, 0]) * X - jnp.sin(fpar[:, 0]) * Y
    Y = jnp.sin(fpar[:, 0]) * X + jnp.cos(fpar[:, 0]) * Y
    X = (fpar[:, 1] + 1) * X
    Y = (fpar[:, 2] + 1) * Y
    X = X.reshape(B, 1, 1)
    Y = Y.reshape(B, 1, 1)
    h = inP // 2
    basis = jnp.concatenate([
        jnp.cos(k1 * X + l1 * Y).reshape(-1, (h + 1) * (h + 1)),
        jnp.cos(k2 * X + l2 * Y).reshape(-1, h * h),
        jnp.sin(k1 * X + l2 * Y).reshape(-1, h * (h + 1)),
        jnp.sin(k2 * X + l1 * Y).reshape(-1, h * (h + 1)),
    ], axis=1)
    out = jnp.einsum('bin,bi->bn', feat, basis)
    return out.reshape(*shape, -1)


if __name__ == "__main__":
    out_dim = 8
    inP = 5
    feat_dim = inP * inP * out_dim + 5 + 2      # 207
    key = jax.random.PRNGKey(0)
    x = jax.random.normal(key, (2, 16, feat_dim), dtype=jnp.float32)

    fwd = jax.jit(functools.partial(f_fun_forward, out_dim=out_dim, inP=inP))
    out = jax.block_until_ready(fwd(x))

    ref = jax.block_until_ready(f_fun_reference(x, out_dim, inP=inP))
    assert out.shape == (2, 16, out_dim), out.shape
    np.testing.assert_allclose(np.asarray(out), np.asarray(ref),
                               rtol=1e-4, atol=1e-4)
    print("KERNEL_OK")
</pallas_src>

<mosaic_0001>
module attributes {stable_mosaic.version = 11 : i64} {
  func.func @kernel(%arg0: i32, %arg1: memref<25x3xf32, #tpu.memory_space<vmem>>, %arg2: memref<207x128xf32, #tpu.memory_space<vmem>>, %arg3: memref<8x128xf32, #tpu.memory_space<vmem>>) attributes {dimension_semantics = [#tpu.dimension_semantics<parallel>], iteration_bounds = array<i64: 1>, scalar_prefetch = 0 : i64, scratch_operands = 0 : i64, tpu.core_type = #tpu.core_type<tc>, window_params = [{pipeline_mode = #tpu.pipeline_mode<synchronous>, transform_indices = @transform_0, window_bounds = array<i64: 25, 3>}, {transform_indices = @transform_1, window_bounds = array<i64: 207, 128>}, {transform_indices = @transform_2, window_bounds = array<i64: 8, 128>}]} {
    %c0 = arith.constant 0 : index
    %c0_0 = arith.constant 0 : index
    %0 = vector.load %arg1[%c0, %c0_0] : memref<25x3xf32, #tpu.memory_space<vmem>>, vector<25x1xf32>
    %c0_1 = arith.constant 0 : index
    %c1 = arith.constant 1 : index
    %1 = vector.load %arg1[%c0_1, %c1] : memref<25x3xf32, #tpu.memory_space<vmem>>, vector<25x1xf32>
    %c0_2 = arith.constant 0 : index
    %c2 = arith.constant 2 : index
    %2 = vector.load %arg1[%c0_2, %c2] : memref<25x3xf32, #tpu.memory_space<vmem>>, vector<25x1xf32>
    %c200 = arith.constant 200 : index
    %c0_3 = arith.constant 0 : index
    %3 = vector.load %arg2[%c200, %c0_3] : memref<207x128xf32, #tpu.memory_space<vmem>>, vector<1x128xf32>
    %c201 = arith.constant 201 : index
    %c0_4 = arith.constant 0 : index
    %4 = vector.load %arg2[%c201, %c0_4] : memref<207x128xf32, #tpu.memory_space<vmem>>, vector<1x128xf32>
    %c202 = arith.constant 202 : index
    %c0_5 = arith.constant 0 : index
    %5 = vector.load %arg2[%c202, %c0_5] : memref<207x128xf32, #tpu.memory_space<vmem>>, vector<1x128xf32>
    %c203 = arith.constant 203 : index
    %c0_6 = arith.constant 0 : index
    %6 = vector.load %arg2[%c203, %c0_6] : memref<207x128xf32, #tpu.memory_space<vmem>>, vector<1x128xf32>
    %c204 = arith.constant 204 : index
    %c0_7 = arith.constant 0 : index
    %7 = vector.load %arg2[%c204, %c0_7] : memref<207x128xf32, #tpu.memory_space<vmem>>, vector<1x128xf32>
    %c205 = arith.constant 205 : index
    %c0_8 = arith.constant 0 : index
    %8 = vector.load %arg2[%c205, %c0_8] : memref<207x128xf32, #tpu.memory_space<vmem>>, vector<1x128xf32>
    %c206 = arith.constant 206 : index
    %c0_9 = arith.constant 0 : index
    %9 = vector.load %arg2[%c206, %c0_9] : memref<207x128xf32, #tpu.memory_space<vmem>>, vector<1x128xf32>
    %cst = arith.constant 5.000000e-01 : f32
    %10 = vector.broadcast %cst : f32 to vector<1x128xf32>
    %11 = arith.mulf %8, %10 : vector<1x128xf32>
    %12 = arith.addf %11, %6 : vector<1x128xf32>
    %cst_10 = arith.constant 5.000000e-01 : f32
    %13 = vector.broadcast %cst_10 : f32 to vector<1x128xf32>
    %14 = arith.mulf %9, %13 : vector<1x128xf32>
    %15 = arith.addf %14, %7 : vector<1x128xf32>
    %16 = math.cos %3 : vector<1x128xf32>
    %17 = math.sin %3 : vector<1x128xf32>
    %18 = arith.mulf %16, %12 : vector<1x128xf32>
    %19 = arith.mulf %17, %15 : vector<1x128xf32>
    %20 = arith.subf %18, %19 : vector<1x128xf32>
    %21 = arith.mulf %17, %20 : vector<1x128xf32>
    %22 = arith.mulf %16, %15 : vector<1x128xf32>
    %23 = arith.addf %21, %22 : vector<1x128xf32>
    %cst_11 = arith.constant 1.000000e+00 : f32
    %24 = vector.broadcast %cst_11 : f32 to vector<1x128xf32>
    %25 = arith.addf %4, %24 : vector<1x128xf32>
    %26 = arith.mulf %25, %20 : vector<1x128xf32>
    %cst_12 = arith.constant 1.000000e+00 : f32
    %27 = vector.broadcast %cst_12 : f32 to vector<1x128xf32>
    %28 = arith.addf %5, %27 : vector<1x128xf32>
    %29 = arith.mulf %28, %23 : vector<1x128xf32>
    %30 = vector.broadcast %0 : vector<25x1xf32> to vector<25x128xf32>
    %31 = vector.broadcast %26 : vector<1x128xf32> to vector<25x128xf32>
    %32 = arith.mulf %30, %31 : vector<25x128xf32>
    %33 = vector.broadcast %1 : vector<25x1xf32> to vector<25x128xf32>
    %34 = vector.broadcast %29 : vector<1x128xf32> to vector<25x128xf32>
    %35 = arith.mulf %33, %34 : vector<25x128xf32>
    %36 = arith.addf %32, %35 : vector<25x128xf32>
    %37 = vector.broadcast %2 : vector<25x1xf32> to vector<25x128xf32>
    %38 = arith.subf %36, %37 : vector<25x128xf32>
    %39 = math.cos %38 : vector<25x128xf32>
    %cst_13 = arith.constant 0.000000e+00 : f32
    %40 = vector.broadcast %cst_13 : f32 to vector<8x128xf32>
    %c0_14 = arith.constant 0 : index
    %c0_15 = arith.constant 0 : index
    %41 = vector.load %arg2[%c0_14, %c0_15] : memref<207x128xf32, #tpu.memory_space<vmem>>, vector<8x128xf32>
    %42 = vector.extract_strided_slice %39 {offsets = [0, 0], sizes = [1, 128], strides = [1, 1]} : vector<25x128xf32> to vector<1x128xf32>
    %43 = vector.broadcast %42 : vector<1x128xf32> to vector<8x128xf32>
    %44 = arith.mulf %41, %43 : vector<8x128xf32>
    %45 = arith.addf %40, %44 : vector<8x128xf32>
    %c8 = arith.constant 8 : index
    %c0_16 = arith.constant 0 : index
    %46 = vector.load %arg2[%c8, %c0_16] : memref<207x128xf32, #tpu.memory_space<vmem>>, vector<8x128xf32>
    %47 = vector.extract_strided_slice %39 {offsets = [1, 0], sizes = [1, 128], strides = [1, 1]} : vector<25x128xf32> to vector<1x128xf32>
    %48 = vector.broadcast %47 : vector<1x128xf32> to vector<8x128xf32>
    %49 = arith.mulf %46, %48 : vector<8x128xf32>
    %50 = arith.addf %45, %49 : vector<8x128xf32>
    %c16 = arith.constant 16 : index
    %c0_17 = arith.constant 0 : index
    %51 = vector.load %arg2[%c16, %c0_17] : memref<207x128xf32, #tpu.memory_space<vmem>>, vector<8x128xf32>
    %52 = vector.extract_strided_slice %39 {offsets = [2, 0], sizes = [1, 128], strides = [1, 1]} : vector<25x128xf32> to vector<1x128xf32>
    %53 = vector.broadcast %52 : vector<1x128xf32> to vector<8x128xf32>
    %54 = arith.mulf %51, %53 : vector<8x128xf32>
    %55 = arith.addf %50, %54 : vector<8x128xf32>
    %c24 = arith.constant 24 : index
    %c0_18 = arith.constant 0 : index
    %56 = vector.load %arg2[%c24, %c0_18] : memref<207x128xf32, #tpu.memory_space<vmem>>, vector<8x128xf32>
    %57 = vector.extract_strided_slice %39 {offsets = [3, 0], sizes = [1, 128], strides = [1, 1]} : vector<25x128xf32> to vector<1x128xf32>
    %58 = vector.broadcast %57 : vector<1x128xf32> to vector<8x128xf32>
    %59 = arith.mulf %56, %58 : vector<8x128xf32>
    %60 = arith.addf %55, %59 : vector<8x128xf32>
    %c32 = arith.constant 32 : index
    %c0_19 = arith.constant 0 : index
    %61 = vector.load %arg2[%c32, %c0_19] : memref<207x128xf32, #tpu.memory_space<vmem>>, vector<8x128xf32>
    %62 = vector.extract_strided_slice %39 {offsets = [4, 0], sizes = [1, 128], strides = [1, 1]} : vector<25x128xf32> to vector<1x128xf32>
    %63 = vector.broadcast %62 : vector<1x128xf32> to vector<8x128xf32>
    %64 = arith.mulf %61, %63 : vector<8x128xf32>
    %65 = arith.addf %60, %64 : vector<8x128xf32>
    %c40 = arith.constant 40 : index
    %c0_20 = arith.constant 0 : index
    %66 = vector.load %arg2[%c40, %c0_20] : memref<207x128xf32, #tpu.memory_space<vmem>>, vector<8x128xf32>
    %67 = vector.extract_strided_slice %39 {offsets = [5, 0], sizes = [1, 128], strides = [1, 1]} : vector<25x128xf32> to vector<1x128xf32>
    %68 = vector.broadcast %67 : vector<1x128xf32> to vector<8x128xf32>
    %69 = arith.mulf %66, %68 : vector<8x128xf32>
    %70 = arith.addf %65, %69 : vector<8x128xf32>
    %c48 = arith.constant 48 : index
    %c0_21 = arith.constant 0 : index
    %71 = vector.load %arg2[%c48, %c0_21] : memref<207x128xf32, #tpu.memory_space<vmem>>, vector<8x128xf32>
    %72 = vector.extract_strided_slice %39 {offsets = [6, 0], sizes = [1, 128], strides = [1, 1]} : vector<25x128xf32> to vector<1x128xf32>
    %73 = vector.broadcast %72 : vector<1x128xf32> to vector<8x128xf32>
    %74 = arith.mulf %71, %73 : vector<8x128xf32>
    %75 = arith.addf %70, %74 : vector<8x128xf32>
    %c56 = arith.constant 56 : index
    %c0_22 = arith.constant 0 : index
    %76 = vector.load %arg2[%c56, %c0_22] : memref<207x128xf32, #tpu.memory_space<vmem>>, vector<8x128xf32>
    %77 = vector.extract_strided_slice %39 {offsets = [7, 0], sizes = [1, 128], strides = [1, 1]} : vector<25x128xf32> to vector<1x128xf32>
    %78 = vector.broadcast %77 : vector<1x128xf32> to vector<8x128xf32>
    %79 = arith.mulf %76, %78 : vector<8x128xf32>
    %80 = arith.addf %75, %79 : vector<8x128xf32>
    %c64 = arith.constant 64 : index
    %c0_23 = arith.constant 0 : index
    %81 = vector.load %arg2[%c64, %c0_23] : memref<207x128xf32, #tpu.memory_space<vmem>>, vector<8x128xf32>
    %82 = vector.extract_strided_slice %39 {offsets = [8, 0], sizes = [1, 128], strides = [1, 1]} : vector<25x128xf32> to vector<1x128xf32>
    %83 = vector.broadcast %82 : vector<1x128xf32> to vector<8x128xf32>
    %84 = arith.mulf %81, %83 : vector<8x128xf32>
    %85 = arith.addf %80, %84 : vector<8x128xf32>
    %c72 = arith.constant 72 : index
    %c0_24 = arith.constant 0 : index
    %86 = vector.load %arg2[%c72, %c0_24] : memref<207x128xf32, #tpu.memory_space<vmem>>, vector<8x128xf32>
    %87 = vector.extract_strided_slice %39 {offsets = [9, 0], sizes = [1, 128], strides = [1, 1]} : vector<25x128xf32> to vector<1x128xf32>
    %88 = vector.broadcast %87 : vector<1x128xf32> to vector<8x128xf32>
    %89 = arith.mulf %86, %88 : vector<8x128xf32>
    %90 = arith.addf %85, %89 : vector<8x128xf32>
    %c80 = arith.constant 80 : index
    %c0_25 = arith.constant 0 : index
    %91 = vector.load %arg2[%c80, %c0_25] : memref<207x128xf32, #tpu.memory_space<vmem>>, vector<8x128xf32>
    %92 = vector.extract_strided_slice %39 {offsets = [10, 0], sizes = [1, 128], strides = [1, 1]} : vector<25x128xf32> to vector<1x128xf32>
    %93 = vector.broadcast %92 : vector<1x128xf32> to vector<8x128xf32>
    %94 = arith.mulf %91, %93 : vector<8x128xf32>
    %95 = arith.addf %90, %94 : vector<8x128xf32>
    %c88 = arith.constant 88 : index
    %c0_26 = arith.constant 0 : index
    %96 = vector.load %arg2[%c88, %c0_26] : memref<207x128xf32, #tpu.memory_space<vmem>>, vector<8x128xf32>
    %97 = vector.extract_strided_slice %39 {offsets = [11, 0], sizes = [1, 128], strides = [1, 1]} : vector<25x128xf32> to vector<1x128xf32>
    %98 = vector.broadcast %97 : vector<1x128xf32> to vector<8x128xf32>
    %99 = arith.mulf %96, %98 : vector<8x128xf32>
    %100 = arith.addf %95, %99 : vector<8x128xf32>
    %c96 = arith.constant 96 : index
    %c0_27 = arith.constant 0 : index
    %101 = vector.load %arg2[%c96, %c0_27] : memref<207x128xf32, #tpu.memory_space<vmem>>, vector<8x128xf32>
    %102 = vector.extract_strided_slice %39 {offsets = [12, 0], sizes = [1, 128], strides = [1, 1]} : vector<25x128xf32> to vector<1x128xf32>
    %103 = vector.broadcast %102 : vector<1x128xf32> to vector<8x128xf32>
    %104 = arith.mulf %101, %103 : vector<8x128xf32>
    %105 = arith.addf %100, %104 : vector<8x128xf32>
    %c104 = arith.constant 104 : index
    %c0_28 = arith.constant 0 : index
    %106 = vector.load %arg2[%c104, %c0_28] : memref<207x128xf32, #tpu.memory_space<vmem>>, vector<8x128xf32>
    %107 = vector.extract_strided_slice %39 {offsets = [13, 0], sizes = [1, 128], strides = [1, 1]} : vector<25x128xf32> to vector<1x128xf32>
    %108 = vector.broadcast %107 : vector<1x128xf32> to vector<8x128xf32>
    %109 = arith.mulf %106, %108 : vector<8x128xf32>
    %110 = arith.addf %105, %109 : vector<8x128xf32>
    %c112 = arith.constant 112 : index
    %c0_29 = arith.constant 0 : index
    %111 = vector.load %arg2[%c112, %c0_29] : memref<207x128xf32, #tpu.memory_space<vmem>>, vector<8x128xf32>
    %112 = vector.extract_strided_slice %39 {offsets = [14, 0], sizes = [1, 128], strides = [1, 1]} : vector<25x128xf32> to vector<1x128xf32>
    %113 = vector.broadcast %112 : vector<1x128xf32> to vector<8x128xf32>
    %114 = arith.mulf %111, %113 : vector<8x128xf32>
    %115 = arith.addf %110, %114 : vector<8x128xf32>
    %c120 = arith.constant 120 : index
    %c0_30 = arith.constant 0 : index
    %116 = vector.load %arg2[%c120, %c0_30] : memref<207x128xf32, #tpu.memory_space<vmem>>, vector<8x128xf32>
    %117 = vector.extract_strided_slice %39 {offsets = [15, 0], sizes = [1, 128], strides = [1, 1]} : vector<25x128xf32> to vector<1x128xf32>
    %118 = vector.broadcast %117 : vector<1x128xf32> to vector<8x128xf32>
    %119 = arith.mulf %116, %118 : vector<8x128xf32>
    %120 = arith.addf %115, %119 : vector<8x128xf32>
    %c128 = arith.constant 128 : index
    %c0_31 = arith.constant 0 : index
    %121 = vector.load %arg2[%c128, %c0_31] : memref<207x128xf32, #tpu.memory_space<vmem>>, vector<8x128xf32>
    %122 = vector.extract_strided_slice %39 {offsets = [16, 0], sizes = [1, 128], strides = [1, 1]} : vector<25x128xf32> to vector<1x128xf32>
    %123 = vector.broadcast %122 : vector<1x128xf32> to vector<8x128xf32>
    %124 = arith.mulf %121, %123 : vector<8x128xf32>
    %125 = arith.addf %120, %124 : vector<8x128xf32>
    %c136 = arith.constant 136 : index
    %c0_32 = arith.constant 0 : index
    %126 = vector.load %arg2[%c136, %c0_32] : memref<207x128xf32, #tpu.memory_space<vmem>>, vector<8x128xf32>
    %127 = vector.extract_strided_slice %39 {offsets = [17, 0], sizes = [1, 128], strides = [1, 1]} : vector<25x128xf32> to vector<1x128xf32>
    %128 = vector.broadcast %127 : vector<1x128xf32> to vector<8x128xf32>
    %129 = arith.mulf %126, %128 : vector<8x128xf32>
    %130 = arith.addf %125, %129 : vector<8x128xf32>
    %c144 = arith.constant 144 : index
    %c0_33 = arith.constant 0 : index
    %131 = vector.load %arg2[%c144, %c0_33] : memref<207x128xf32, #tpu.memory_space<vmem>>, vector<8x128xf32>
    %132 = vector.extract_strided_slice %39 {offsets = [18, 0], sizes = [1, 128], strides = [1, 1]} : vector<25x128xf32> to vector<1x128xf32>
    %133 = vector.broadcast %132 : vector<1x128xf32> to vector<8x128xf32>
    %134 = arith.mulf %131, %133 : vector<8x128xf32>
    %135 = arith.addf %130, %134 : vector<8x128xf32>
    %c152 = arith.constant 152 : index
    %c0_34 = arith.constant 0 : index
    %136 = vector.load %arg2[%c152, %c0_34] : memref<207x128xf32, #tpu.memory_space<vmem>>, vector<8x128xf32>
    %137 = vector.extract_strided_slice %39 {offsets = [19, 0], sizes = [1, 128], strides = [1, 1]} : vector<25x128xf32> to vector<1x128xf32>
    %138 = vector.broadcast %137 : vector<1x128xf32> to vector<8x128xf32>
    %139 = arith.mulf %136, %138 : vector<8x128xf32>
    %140 = arith.addf %135, %139 : vector<8x128xf32>
    %c160 = arith.constant 160 : index
    %c0_35 = arith.constant 0 : index
    %141 = vector.load %arg2[%c160, %c0_35] : memref<207x128xf32, #tpu.memory_space<vmem>>, vector<8x128xf32>
    %142 = vector.extract_strided_slice %39 {offsets = [20, 0], sizes = [1, 128], strides = [1, 1]} : vector<25x128xf32> to vector<1x128xf32>
    %143 = vector.broadcast %142 : vector<1x128xf32> to vector<8x128xf32>
    %144 = arith.mulf %141, %143 : vector<8x128xf32>
    %145 = arith.addf %140, %144 : vector<8x128xf32>
    %c168 = arith.constant 168 : index
    %c0_36 = arith.constant 0 : index
    %146 = vector.load %arg2[%c168, %c0_36] : memref<207x128xf32, #tpu.memory_space<vmem>>, vector<8x128xf32>
    %147 = vector.extract_strided_slice %39 {offsets = [21, 0], sizes = [1, 128], strides = [1, 1]} : vector<25x128xf32> to vector<1x128xf32>
    %148 = vector.broadcast %147 : vector<1x128xf32> to vector<8x128xf32>
    %149 = arith.mulf %146, %148 : vector<8x128xf32>
    %150 = arith.addf %145, %149 : vector<8x128xf32>
    %c176 = arith.constant 176 : index
    %c0_37 = arith.constant 0 : index
    %151 = vector.load %arg2[%c176, %c0_37] : memref<207x128xf32, #tpu.memory_space<vmem>>, vector<8x128xf32>
    %152 = vector.extract_strided_slice %39 {offsets = [22, 0], sizes = [1, 128], strides = [1, 1]} : vector<25x128xf32> to vector<1x128xf32>
    %153 = vector.broadcast %152 : vector<1x128xf32> to vector<8x128xf32>
    %154 = arith.mulf %151, %153 : vector<8x128xf32>
    %155 = arith.addf %150, %154 : vector<8x128xf32>
    %c184 = arith.constant 184 : index
    %c0_38 = arith.constant 0 : index
    %156 = vector.load %arg2[%c184, %c0_38] : memref<207x128xf32, #tpu.memory_space<vmem>>, vector<8x128xf32>
    %157 = vector.extract_strided_slice %39 {offsets = [23, 0], sizes = [1, 128], strides = [1, 1]} : vector<25x128xf32> to vector<1x128xf32>
    %158 = vector.broadcast %157 : vector<1x128xf32> to vector<8x128xf32>
    %159 = arith.mulf %156, %158 : vector<8x128xf32>
    %160 = arith.addf %155, %159 : vector<8x128xf32>
    %c192 = arith.constant 192 : index
    %c0_39 = arith.constant 0 : index
    %161 = vector.load %arg2[%c192, %c0_39] : memref<207x128xf32, #tpu.memory_space<vmem>>, vector<8x128xf32>
    %162 = vector.extract_strided_slice %39 {offsets = [24, 0], sizes = [1, 128], strides = [1, 1]} : vector<25x128xf32> to vector<1x128xf32>
    %163 = vector.broadcast %162 : vector<1x128xf32> to vector<8x128xf32>
    %164 = arith.mulf %161, %163 : vector<8x128xf32>
    %165 = arith.addf %160, %164 : vector<8x128xf32>
    %c0_40 = arith.constant 0 : index
    %c0_41 = arith.constant 0 : index
    %166 = vector.load %arg3[%c0_40, %c0_41] : memref<8x128xf32, #tpu.memory_space<vmem>>, vector<8x128xf32>
    tpu.vector_store %arg3[%c0_40, %c0_41], %165 {strides = array<i32>} : memref<8x128xf32, #tpu.memory_space<vmem>>, vector<8x128xf32>,
    return
  }
  func.func @transform_0(%arg0: i32) -> (i32, i32) {
    %c0_i32 = arith.constant 0 : i32
    %c0_i32_0 = arith.constant 0 : i32
    %c0_i32_1 = arith.constant 0 : i32
    return %c0_i32, %c0_i32_0 : i32, i32
  }
  func.func @transform_1(%arg0: i32) -> (i32, i32) {
    %c0_i32 = arith.constant 0 : i32
    %c0_i32_0 = arith.constant 0 : i32
    return %c0_i32, %arg0 : i32, i32
  }
  func.func @transform_2(%arg0: i32) -> (i32, i32) {
    %c0_i32 = arith.constant 0 : i32
    %c0_i32_0 = arith.constant 0 : i32
    return %c0_i32, %arg0 : i32, i32
  }
}

</mosaic_0001>

<llo_original>
// kernel: f_fun_forward.1
$region0: #{f_fun_forward.1}
  #allocation0 [shape = 'u32[]', space=smem, size = 0x4, offset = 0x4, fixed_abs, tag = 'smem constant byte address 0x4 - core index']
  #allocation1 [shape = 'u32[144,128]{1,0:T(1,128)}', space=vmem, size = 0x12000, scoped, tag = 'internal scratch']
  %s0 = inlined_call_operand.vmem [shape: f32[25,3], index: 0, kind: input, shape index: {}]
  %s1 = inlined_call_operand.vmem [shape: f32[207,128], index: 1, kind: input, shape index: {}]
  %s2 = inlined_call_operand.vmem [shape: f32[8,128], index: 2, kind: output, shape index: {}]
  %s3 = sld [smem:[#allocation0]]
  $region18: #{f_fun_forward.1} parent=0
    _
  %s5 = ssub.s32 1, %s3
  %s6 = scalar_select 0, %s5, %s3
  // Predicated region
  $region2: #{f_fun_forward.1} parent=0 // pred_check
    _
  $region3: #{f_fun_forward.1} parent=0 // pred_check_branch
    %8 = sbr.rel (0) target = $region5
  $region4: #{f_fun_forward.1} parent=0 // pred_region
    _
  $region5: #{f_fun_forward.1} parent=0 // pred_fallthru
    _
  // Predicated region
  $region6: #{f_fun_forward.1} parent=0 // pred_check
    _
  $region7: #{f_fun_forward.1} parent=0 // pred_check_branch
    %10 = sbr.rel (0) target = $region9
  $region8: #{f_fun_forward.1} parent=0 // pred_region
    _
  $region9: #{f_fun_forward.1} parent=0 // pred_fallthru
    _
  %v11 = vld [vmem:[%s0] sm:$0xff]
  %v12 = vld [vmem:[%s0 + $0x8] sm:$0xff]
  %v13 = vld [vmem:[%s0 + $0x10] sm:$0xff]
  %v14 = vld [vmem:[%s0 + $0x18] sm:$0x1]
  %v15 = vld [vmem:[%s1 + $0xc8] sm:$0x1]
  %v16 = vld [vmem:[%s1 + $0xc9] sm:$0x1]
  %v17 = vld [vmem:[%s1 + $0xca] sm:$0x1]
  %v18 = vld [vmem:[%s1 + $0xcb] sm:$0x1]
  %v19 = vld [vmem:[%s1 + $0xcc] sm:$0x1]
  %v20 = vld [vmem:[%s1 + $0xcd] sm:$0x1]
  %v21 = vld [vmem:[%s1 + $0xce] sm:$0x1]
  %v22 = vmul.f32 %v20, 0.5
  %v23 = vadd.f32 %v22, %v18
  %v24 = vmul.f32 %v21, 0.5
  %v25 = vadd.f32 %v24, %v19
  %v26 = vand.u32 2147483647, %v15
  %vm27 = vcmp.le.f32.partialorder %v26, 0.7853982
  %vm28 = vcmp.lt.s32.totalorder %v15, 0
  %v29 = vand.u32 %v15, 2139095040
  %v30 = vshrl.u32 %v29, 23
  %v31 = vsub.s32 %v30, 127
  %v32 = vand.u32 2147483647, %v15
  %v33 = vand.u32 %v32, 8388607
  %v34 = vor.u32 %v33, 8388608
  %v35 = vsub.s32 0, %v34
  %v36 = vadd.s32 %v31, 1
  %vm37 = vcmp.gt.s32.totalorder %v36, 0
  %v38 = vsel %vm37, %v36, 0
  %v39 = vshrl.u32 %v38, 5
  %v40 = vand.u32 %v38, 31
  %v41 = vsub.s32 32, %v40
  %v42 = vshrl.u32 683565275, %v41
  %v43 = vshll.u32 683565275, %v40
  %v44 = vshrl.u32 2475754826, %v41
  %v45 = vor.u32 %v43, %v44
  %v46 = vshll.u32 2475754826, %v40
  %v47 = vshrl.u32 2131351028, %v41
  %v48 = vor.u32 %v46, %v47
  %v49 = vshll.u32 2131351028, %v40
  %v50 = vshrl.u32 2102212464, %v41
  %v51 = vor.u32 %v49, %v50
  %v52 = vshll.u32 2102212464, %v40
  %v53 = vshrl.u32 920167782, %v41
  %v54 = vor.u32 %v52, %v53
  %v55 = vshll.u32 920167782, %v40
  %v56 = vshrl.u32 1326507024, %v41
  %v57 = vor.u32 %v55, %v56
  %vm58 = vcmp.lt.s32.totalorder %v39, 1
  %vm59 = vcmp.lt.s32.totalorder %v39, 2
  %vm60 = vcmp.lt.s32.totalorder %v39, 3
  %vm61 = vcmp.lt.s32.totalorder %v39, 4
  %v62 = vsel %vm58, %v42, %v45
  %v63 = vsel %vm61, %v51, 2102212464
  %v64 = vsel %vm60, %v48, %v63
  %v65 = vsel %vm59, %v62, %v64
  %v66 = vsel %vm58, %v45, %v48
  %v67 = vsel %vm61, %v54, 920167782
  %v68 = vsel %vm60, %v51, %v67
  %v69 = vsel %vm59, %v66, %v68
  %v70 = vsel %vm58, %v48, %v51
  %v71 = vsel %vm61, %v57, 1326507024
  %v72 = vsel %vm60, %v54, %v71
  %v73 = vsel %vm59, %v70, %v72
  %v74 = vshll.u32 %v34, 8
  %v75 = vmul.u32.u64.compose %v74, %v73
  %v76 = vextract.low.u32 %v75
  %v77 = vextract.high.u32 %v75
  %v78 = vmul.u32.u64.compose %v74, %v69
  %v79 = vextract.low.u32 %v78
  %v80 = vextract.high.u32 %v78
  %v81 = vmul.u32 %v74, %v65
  %v82 = vadd.s32 %v77, %v79
  %vm83 = vc.u32 %v77, %v79
  %v84 = vadd.s32 %v80, 1
  %v85 = vsel %vm83, %v84, %v80
  %v86 = vadd.s32 %v81, %v85
  %v87 = vadd.s32 %v86, 536870912
  %v88 = vshrl.u32 %v87, 30
  %v89 = vshll.u32 %v88, 30
  %v90 = vsub.s32 %v86, %v89
  %vm91 = vcmp.lt.s32.totalorder %v90, 0
  %v92 = vsub.s32 0, %v90
  %v93 = vsel %vm91, %v92, %v90
  %v94 = vclz %v93
  %v95 = vsub.s32 %v94, 2
  %vm96 = vcmp.gt.s32.totalorder 0, %v95
  %v97 = vsel %vm96, 0, %v95
  %v98 = vsub.s32 32, %v97
  %v99 = vshll.u32 %v90, %v97
  %v100 = vshrl.u32 %v82, %v98
  %v101 = vor.u32 %v99, %v100
  %v102 = vsub.s32 4294967266, %v97
  %v103 = vadd.s32 %v102, 127
  %v104 = vshll.u32 %v103, 23
  %v105 = vor.u32 4788187, %v104
  %v106 = vand.u32 2147483647, %v105
  %v108 = vcvt.s32.f32 %v101
  %v109 = vmul.f32 %v108, %v106
  %v110 = vxor.u32 %v109, 2147483648
  %v111 = vsel %vm28, %v110, %v109
  %v112 = vsub.s32 4, %v88
  %v113 = vsel %vm28, %v112, %v88
  %v114 = vsel %vm27, %v15, %v111
  %v115 = vsel %vm27, 0, %v113
  %v116 = vcosq.f32.pop %v114
  %v117 = vsinq.f32.pop %v114
  %vm118 = vweird.f32 %v15
  %v119 = vand.u32 %v115, 3
  %vm120 = vcmp.lt.s32.totalorder %v119, 2
  %vm121 = vcmp.eq.s32.totalorder %v119, 0
  %v122 = vxor.u32 %v117, 2147483648
  %v123 = vsel %vm121, %v116, %v122
  %vm124 = vcmp.eq.s32.totalorder %v119, 2
  %v125 = vxor.u32 %v116, 2147483648
  %v126 = vsel %vm124, %v125, %v117
  %v127 = vsel %vm120, %v123, %v126
  %v128 = vsel %vm118, nan, %v127
  %v129 = vand.u32 2147483647, %v15
  %vm130 = vcmp.le.f32.partialorder %v129, 0.7853982
  %vm131 = vcmp.lt.s32.totalorder %v15, 0
  %v132 = vand.u32 %v15, 2139095040
  %v133 = vshrl.u32 %v132, 23
  %v134 = vsub.s32 %v133, 127
  %v135 = vand.u32 2147483647, %v15
  %v136 = vand.u32 %v135, 8388607
  %v137 = vor.u32 %v136, 8388608
  %v138 = vsub.s32 0, %v137
  %v139 = vadd.s32 %v134, 1
  %vm140 = vcmp.gt.s32.totalorder %v139, 0
  %v141 = vsel %vm140, %v139, 0
  %v142 = vshrl.u32 %v141, 5
  %v143 = vand.u32 %v141, 31
  %v144 = vsub.s32 32, %v143
  %v145 = vshrl.u32 683565275, %v144
  %v146 = vshll.u32 683565275, %v143
  %v147 = vshrl.u32 2475754826, %v144
  %v148 = vor.u32 %v146, %v147
  %v149 = vshll.u32 2475754826, %v143
  %v150 = vshrl.u32 2131351028, %v144
  %v151 = vor.u32 %v149, %v150
  %v152 = vshll.u32 2131351028, %v143
  %v153 = vshrl.u32 2102212464, %v144
  %v154 = vor.u32 %v152, %v153
  %v155 = vshll.u32 2102212464, %v143
  %v156 = vshrl.u32 920167782, %v144
  %v157 = vor.u32 %v155, %v156
  %v158 = vshll.u32 920167782, %v143
  %v159 = vshrl.u32 1326507024, %v144
  %v160 = vor.u32 %v158, %v159
  %vm161 = vcmp.lt.s32.totalorder %v142, 1
  %vm162 = vcmp.lt.s32.totalorder %v142, 2
  %vm163 = vcmp.lt.s32.totalorder %v142, 3
  %vm164 = vcmp.lt.s32.totalorder %v142, 4
  %v165 = vsel %vm161, %v145, %v148
  %v166 = vsel %vm164, %v154, 2102212464
  %v167 = vsel %vm163, %v151, %v166
  %v168 = vsel %vm162, %v165, %v167
  %v169 = vsel %vm161, %v148, %v151
  %v170 = vsel %vm164, %v157, 920167782
  %v171 = vsel %vm163, %v154, %v170
  %v172 = vsel %vm162, %v169, %v171
  %v173 = vsel %vm161, %v151, %v154
  %v174 = vsel %vm164, %v160, 1326507024
  %v175 = vsel %vm163, %v157, %v174
  %v176 = vsel %vm162, %v173, %v175
  %v177 = vshll.u32 %v137, 8
  %v178 = vmul.u32.u64.compose %v177, %v176
  %v179 = vextract.low.u32 %v178
  %v180 = vextract.high.u32 %v178
  %v181 = vmul.u32.u64.compose %v177, %v172
  %v182 = vextract.low.u32 %v181
  %v183 = vextract.high.u32 %v181
  %v184 = vmul.u32 %v177, %v168
  %v185 = vadd.s32 %v180, %v182
  %vm186 = vc.u32 %v180, %v182
  %v187 = vadd.s32 %v183, 1
  %v188 = vsel %vm186, %v187, %v183
  %v189 = vadd.s32 %v184, %v188
  %v190 = vadd.s32 %v189, 536870912
  %v191 = vshrl.u32 %v190, 30
  %v192 = vshll.u32 %v191, 30
  %v193 = vsub.s32 %v189, %v192
  %vm194 = vcmp.lt.s32.totalorder %v193, 0
  %v195 = vsub.s32 0, %v193
  %v196 = vsel %vm194, %v195, %v193
  %v197 = vclz %v196
  %v198 = vsub.s32 %v197, 2
  %vm199 = vcmp.gt.s32.totalorder 0, %v198
  %v200 = vsel %vm199, 0, %v198
  %v201 = vsub.s32 32, %v200
  %v202 = vshll.u32 %v193, %v200
  %v203 = vshrl.u32 %v185, %v201
  %v204 = vor.u32 %v202, %v203
  %v205 = vsub.s32 4294967266, %v200
  %v206 = vadd.s32 %v205, 127
  %v207 = vshll.u32 %v206, 23
  %v208 = vor.u32 4788187, %v207
  %v209 = vand.u32 2147483647, %v208
  %v211 = vcvt.s32.f32 %v204
  %v212 = vmul.f32 %v211, %v209
  %v213 = vxor.u32 %v212, 2147483648
  %v214 = vsel %vm131, %v213, %v212
  %v215 = vsub.s32 4, %v191
  %v216 = vsel %vm131, %v215, %v191
  %v217 = vsel %vm130, %v15, %v214
  %v218 = vsel %vm130, 0, %v216
  %v219 = vcosq.f32.pop %v217
  %v220 = vsinq.f32.pop %v217
  %vm221 = vweird.f32 %v15
  %v222 = vadd.s32 %v218, 3
  %v223 = vand.u32 %v222, 3
  %vm224 = vcmp.lt.s32.totalorder %v223, 2
  %vm225 = vcmp.eq.s32.totalorder %v223, 0
  %v226 = vxor.u32 %v220, 2147483648
  %v227 = vsel %vm225, %v219, %v226
  %vm228 = vcmp.eq.s32.totalorder %v223, 2
  %v229 = vxor.u32 %v219, 2147483648
  %v230 = vsel %vm228, %v229, %v220
  %v231 = vsel %vm224, %v227, %v230
  %v232 = vsel %vm221, nan, %v231
  %v233 = vmul.f32 %v128, %v23
  %v234 = vmul.f32 %v232, %v25
  %v235 = vsub.f32 %v233, %v234
  %v236 = vmul.f32 %v232, %v235
  %v237 = vmul.f32 %v128, %v25
  %v238 = vadd.f32 %v236, %v237
  %v239 = vadd.f32 %v16, 1.0
  %v240 = vmul.f32 %v239, %v235
  %v241 = vadd.f32 %v17, 1.0
  %v242 = vmul.f32 %v241, %v238
  %244 = vset.pattern.permute.xlu0 0
  %245 = vperm.xlu0 %244, %v11
  %v246 = vpop.permute.xlu0 %245
  %249 = vset.pattern.permute.xlu0 0
  %250 = vperm.xlu0 %249, %v12
  %v251 = vpop.permute.xlu0 %250
  %254 = vset.pattern.permute.xlu0 0
  %255 = vperm.xlu0 %254, %v13
  %v256 = vpop.permute.xlu0 %255
  %259 = vset.pattern.permute.xlu0 0
  %260 = vperm.xlu0 %259, %v14
  %v261 = vpop.permute.xlu0 %260
  %v263 = vlaneseq
  %v264 = vshrl.u32 %v263, 7
  %v265 = vsub.s32 0, %v264
  %v266 = vrot.slane %v240, %v265
  %v267 = vmul.f32 %v246, %v266
  %v268 = vmul.f32 %v251, %v266
  %v269 = vmul.f32 %v256, %v266
  %v270 = vmul.f32 %v261, %v266
  %271 = vset.pattern.permute.xlu0 1
  %272 = vperm.xlu0 %271, %v11
  %v273 = vpop.permute.xlu0 %272
  %275 = vset.pattern.permute.xlu0 1
  %276 = vperm.xlu0 %275, %v12
  %v277 = vpop.permute.xlu0 %276
  %279 = vset.pattern.permute.xlu0 1
  %280 = vperm.xlu0 %279, %v13
  %v281 = vpop.permute.xlu0 %280
  %283 = vset.pattern.permute.xlu0 1
  %284 = vperm.xlu0 %283, %v14
  %v285 = vpop.permute.xlu0 %284
  %v287 = vlaneseq
  %v288 = vshrl.u32 %v287, 7
  %v289 = vsub.s32 0, %v288
  %v290 = vrot.slane %v242, %v289
  %v291 = vmul.f32 %v273, %v290
  %v292 = vmul.f32 %v277, %v290
  %v293 = vmul.f32 %v281, %v290
  %v294 = vmul.f32 %v285, %v290
  %v295 = vadd.f32 %v267, %v291
  %v296 = vadd.f32 %v268, %v292
  %v297 = vadd.f32 %v269, %v293
  %v298 = vadd.f32 %v270, %v294
  %299 = vset.pattern.permute.xlu0 2
  %300 = vperm.xlu0 %299, %v11
  %v301 = vpop.permute.xlu0 %300
  %303 = vset.pattern.permute.xlu0 2
  %304 = vperm.xlu0 %303, %v12
  %v305 = vpop.permute.xlu0 %304
  %307 = vset.pattern.permute.xlu0 2
  %308 = vperm.xlu0 %307, %v13
  %v309 = vpop.permute.xlu0 %308
  %311 = vset.pattern.permute.xlu0 2
  %312 = vperm.xlu0 %311, %v14
  %v313 = vpop.permute.xlu0 %312
  %v315 = vsub.f32 %v295, %v301
  %v316 = vsub.f32 %v296, %v305
  %v317 = vsub.f32 %v297, %v309
  %v318 = vsub.f32 %v298, %v313
  %v319 = vand.u32 2147483647, %v315
  %vm320 = vcmp.le.f32.partialorder %v319, 0.7853982
  %vm321 = vcmp.lt.s32.totalorder %v315, 0
  %v322 = vand.u32 %v315, 2139095040
  %v323 = vshrl.u32 %v322, 23
  %v324 = vsub.s32 %v323, 127
  %v325 = vand.u32 2147483647, %v315
  %v326 = vand.u32 %v325, 8388607
  %v327 = vor.u32 %v326, 8388608
  %v328 = vsub.s32 0, %v327
  %v329 = vadd.s32 %v324, 1
  %vm330 = vcmp.gt.s32.totalorder %v329, 0
  %v331 = vsel %vm330, %v329, 0
  %v332 = vshrl.u32 %v331, 5
  %v333 = vand.u32 %v331, 31
  %v334 = vsub.s32 32, %v333
  %v335 = vshrl.u32 683565275, %v334
  %v336 = vshll.u32 683565275, %v333
  %v337 = vshrl.u32 2475754826, %v334
  %v338 = vor.u32 %v336, %v337
  %v339 = vshll.u32 2475754826, %v333
  %v340 = vshrl.u32 2131351028, %v334
  %v341 = vor.u32 %v339, %v340
  %v342 = vshll.u32 2131351028, %v333
  %v343 = vshrl.u32 2102212464, %v334
  %v344 = vor.u32 %v342, %v343
  %v345 = vshll.u32 2102212464, %v333
  %v346 = vshrl.u32 920167782, %v334
  %v347 = vor.u32 %v345, %v346
  %v348 = vshll.u32 920167782, %v333
  %v349 = vshrl.u32 1326507024, %v334
  %v350 = vor.u32 %v348, %v349
  %vm351 = vcmp.lt.s32.totalorder %v332, 1
  %vm352 = vcmp.lt.s32.totalorder %v332, 2
  %vm353 = vcmp.lt.s32.totalorder %v332, 3
  %vm354 = vcmp.lt.s32.totalorder %v332, 4
  %v355 = vsel %vm351, %v335, %v338
  %v356 = vsel %vm354, %v344, 2102212464
  %v357 = vsel %vm353, %v341, %v356
  %v358 = vsel %vm352, %v355, %v357
  %v359 = vsel %vm351, %v338, %v341
  %v360 = vsel %vm354, %v347, 920167782
  %v361 = vsel %vm353, %v344, %v360
  %v362 = vsel %vm352, %v359, %v361
  %v363 = vsel %vm351, %v341, %v344
  %v364 = vsel %vm354, %v350, 1326507024
  %v365 = vsel %vm353, %v347, %v364
  %v366 = vsel %vm352, %v363, %v365
  %v367 = vshll.u32 %v327, 8
  %v368 = vmul.u32.u64.compose %v367, %v366
  %v369 = vextract.low.u32 %v368
  %v370 = vextract.high.u32 %v368
  %v371 = vmul.u32.u64.compose %v367, %v362
  %v372 = vextract.low.u32 %v371
  %v373 = vextract.high.u32 %v371
  %v374 = vmul.u32 %v367, %v358
  %v375 = vadd.s32 %v370, %v372
  %vm376 = vc.u32 %v370, %v372
  %v377 = vadd.s32 %v373, 1
  %v378 = vsel %vm376, %v377, %v373
  %v379 = vadd.s32 %v374, %v378
  %v380 = vadd.s32 %v379, 536870912
  %v381 = vshrl.u32 %v380, 30
  %v382 = vshll.u32 %v381, 30
  %v383 = vsub.s32 %v379, %v382
  %vm384 = vcmp.lt.s32.totalorder %v383, 0
  %v385 = vsub.s32 0, %v383
  %v386 = vsel %vm384, %v385, %v383
  %v387 = vclz %v386
  %v388 = vsub.s32 %v387, 2
  %vm389 = vcmp.gt.s32.totalorder 0, %v388
  %v390 = vsel %vm389, 0, %v388
  %v391 = vsub.s32 32, %v390
  %v392 = vshll.u32 %v383, %v390
  %v393 = vshrl.u32 %v375, %v391
  %v394 = vor.u32 %v392, %v393
  %v395 = vsub.s32 4294967266, %v390
  %v396 = vadd.s32 %v395, 127
  %v397 = vshll.u32 %v396, 23
  %v398 = vor.u32 4788187, %v397
  %v399 = vand.u32 2147483647, %v398
  %v401 = vcvt.s32.f32 %v394
  %v402 = vmul.f32 %v401, %v399
  %v403 = vxor.u32 %v402, 2147483648
  %v404 = vsel %vm321, %v403, %v402
  %v405 = vsub.s32 4, %v381
  %v406 = vsel %vm321, %v405, %v381
  %v407 = vsel %vm320, %v315, %v404
  %v408 = vsel %vm320, 0, %v406
  %v409 = vcosq.f32.pop %v407
  %v410 = vsinq.f32.pop %v407
  %vm411 = vweird.f32 %v315
  %v412 = vand.u32 %v408, 3
  %vm413 = vcmp.lt.s32.totalorder %v412, 2
  %vm414 = vcmp.eq.s32.totalorder %v412, 0
  %v415 = vxor.u32 %v410, 2147483648
  %v416 = vsel %vm414, %v409, %v415
  %vm417 = vcmp.eq.s32.totalorder %v412, 2
  %v418 = vxor.u32 %v409, 2147483648
  %v419 = vsel %vm417, %v418, %v410
  %v420 = vsel %vm413, %v416, %v419
  %v421 = vsel %vm411, nan, %v420
  %v422 = vand.u32 2147483647, %v316
  %vm423 = vcmp.le.f32.partialorder %v422, 0.7853982
  %vm424 = vcmp.lt.s32.totalorder %v316, 0
  %v425 = vand.u32 %v316, 2139095040
  %v426 = vshrl.u32 %v425, 23
  %v427 = vsub.s32 %v426, 127
  %v428 = vand.u32 2147483647, %v316
  %v429 = vand.u32 %v428, 8388607
  %v430 = vor.u32 %v429, 8388608
  %v431 = vsub.s32 0, %v430
  %v432 = vadd.s32 %v427, 1
  %vm433 = vcmp.gt.s32.totalorder %v432, 0
  %v434 = vsel %vm433, %v432, 0
  %v435 = vshrl.u32 %v434, 5
  %v436 = vand.u32 %v434, 31
  %v437 = vsub.s32 32, %v436
  %v438 = vshrl.u32 683565275, %v437
  %v439 = vshll.u32 683565275, %v436
  %v440 = vshrl.u32 2475754826, %v437
  %v441 = vor.u32 %v439, %v440
  %v442 = vshll.u32 2475754826, %v436
  %v443 = vshrl.u32 2131351028, %v437
  %v444 = vor.u32 %v442, %v443
  %v445 = vshll.u32 2131351028, %v436
  %v446 = vshrl.u32 2102212464, %v437
  %v447 = vor.u32 %v445, %v446
  %v448 = vshll.u32 2102212464, %v436
  %v449 = vshrl.u32 920167782, %v437
  %v450 = vor.u32 %v448, %v449
  %v451 = vshll.u32 920167782, %v436
  %v452 = vshrl.u32 1326507024, %v437
  %v453 = vor.u32 %v451, %v452
  %vm454 = vcmp.lt.s32.totalorder %v435, 1
  %vm455 = vcmp.lt.s32.totalorder %v435, 2
  %vm456 = vcmp.lt.s32.totalorder %v435, 3
  %vm457 = vcmp.lt.s32.totalorder %v435, 4
  %v458 = vsel %vm454, %v438, %v441
  %v459 = vsel %vm457, %v447, 2102212464
  %v460 = vsel %vm456, %v444, %v459
  %v461 = vsel %vm455, %v458, %v460
  %v462 = vsel %vm454, %v441, %v444
  %v463 = vsel %vm457, %v450, 920167782
  %v464 = vsel %vm456, %v447, %v463
  %v465 = vsel %vm455, %v462, %v464
  %v466 = vsel %vm454, %v444, %v447
  %v467 = vsel %vm457, %v453, 1326507024
  %v468 = vsel %vm456, %v450, %v467
  %v469 = vsel %vm455, %v466, %v468
  %v470 = vshll.u32 %v430, 8
  %v471 = vmul.u32.u64.compose %v470, %v469
  %v472 = vextract.low.u32 %v471
  %v473 = vextract.high.u32 %v471
  %v474 = vmul.u32.u64.compose %v470, %v465
  %v475 = vextract.low.u32 %v474
  %v476 = vextract.high.u32 %v474
  %v477 = vmul.u32 %v470, %v461
  %v478 = vadd.s32 %v473, %v475
  %vm479 = vc.u32 %v473, %v475
  %v480 = vadd.s32 %v476, 1
  %v481 = vsel %vm479, %v480, %v476
  %v482 = vadd.s32 %v477, %v481
  %v483 = vadd.s32 %v482, 536870912
  %v484 = vshrl.u32 %v483, 30
  %v485 = vshll.u32 %v484, 30
  %v486 = vsub.s32 %v482, %v485
  %vm487 = vcmp.lt.s32.totalorder %v486, 0
  %v488 = vsub.s32 0, %v486
  %v489 = vsel %vm487, %v488, %v486
  %v490 = vclz %v489
  %v491 = vsub.s32 %v490, 2
  %vm492 = vcmp.gt.s32.totalorder 0, %v491
  %v493 = vsel %vm492, 0, %v491
  %v494 = vsub.s32 32, %v493
  %v495 = vshll.u32 %v486, %v493
  %v496 = vshrl.u32 %v478, %v494
  %v497 = vor.u32 %v495, %v496
  %v498 = vsub.s32 4294967266, %v493
  %v499 = vadd.s32 %v498, 127
  %v500 = vshll.u32 %v499, 23
  %v501 = vor.u32 4788187, %v500
  %v502 = vand.u32 2147483647, %v501
  %v504 = vcvt.s32.f32 %v497
  %v505 = vmul.f32 %v504, %v502
  %v506 = vxor.u32 %v505, 2147483648
  %v507 = vsel %vm424, %v506, %v505
  %v508 = vsub.s32 4, %v484
  %v509 = vsel %vm424, %v508, %v484
  %v510 = vsel %vm423, %v316, %v507
  %v511 = vsel %vm423, 0, %v509
  %v512 = vcosq.f32.pop %v510
  %v513 = vsinq.f32.pop %v510
  %vm514 = vweird.f32 %v316
  %v515 = vand.u32 %v511, 3
  %vm516 = vcmp.lt.s32.totalorder %v515, 2
  %vm517 = vcmp.eq.s32.totalorder %v515, 0
  %v518 = vxor.u32 %v513, 2147483648
  %v519 = vsel %vm517, %v512, %v518
  %vm520 = vcmp.eq.s32.totalorder %v515, 2
  %v521 = vxor.u32 %v512, 2147483648
  %v522 = vsel %vm520, %v521, %v513
  %v523 = vsel %vm516, %v519, %v522
  %v524 = vsel %vm514, nan, %v523
  %v525 = vand.u32 2147483647, %v317
  %vm526 = vcmp.le.f32.partialorder %v525, 0.7853982
  %vm527 = vcmp.lt.s32.totalorder %v317, 0
  %v528 = vand.u32 %v317, 2139095040
  %v529 = vshrl.u32 %v528, 23
  %v530 = vsub.s32 %v529, 127
  %v531 = vand.u32 2147483647, %v317
  %v532 = vand.u32 %v531, 8388607
  %v533 = vor.u32 %v532, 8388608
  %v534 = vsub.s32 0, %v533
  %v535 = vadd.s32 %v530, 1
  %vm536 = vcmp.gt.s32.totalorder %v535, 0
  %v537 = vsel %vm536, %v535, 0
  %v538 = vshrl.u32 %v537, 5
  %v539 = vand.u32 %v537, 31
  %v540 = vsub.s32 32, %v539
  %v541 = vshrl.u32 683565275, %v540
  %v542 = vshll.u32 683565275, %v539
  %v543 = vshrl.u32 2475754826, %v540
  %v544 = vor.u32 %v542, %v543
  %v545 = vshll.u32 2475754826, %v539
  %v546 = vshrl.u32 2131351028, %v540
  %v547 = vor.u32 %v545, %v546
  %v548 = vshll.u32 2131351028, %v539
  %v549 = vshrl.u32 2102212464, %v540
  %v550 = vor.u32 %v548, %v549
  %v551 = vshll.u32 2102212464, %v539
  %v552 = vshrl.u32 920167782, %v540
  %v553 = vor.u32 %v551, %v552
  %v554 = vshll.u32 920167782, %v539
  %v555 = vshrl.u32 1326507024, %v540
  %v556 = vor.u32 %v554, %v555
  %vm557 = vcmp.lt.s32.totalorder %v538, 1
  %vm558 = vcmp.lt.s32.totalorder %v538, 2
  %vm559 = vcmp.lt.s32.totalorder %v538, 3
  %vm560 = vcmp.lt.s32.totalorder %v538, 4
  %v561 = vsel %vm557, %v541, %v544
  %v562 = vsel %vm560, %v550, 2102212464
  %v563 = vsel %vm559, %v547, %v562
  %v564 = vsel %vm558, %v561, %v563
  %v565 = vsel %vm557, %v544, %v547
  %v566 = vsel %vm560, %v553, 920167782
  %v567 = vsel %vm559, %v550, %v566
  %v568 = vsel %vm558, %v565, %v567
  %v569 = vsel %vm557, %v547, %v550
  %v570 = vsel %vm560, %v556, 1326507024
  %v571 = vsel %vm559, %v553, %v570
  %v572 = vsel %vm558, %v569, %v571
  %v573 = vshll.u32 %v533, 8
  %v574 = vmul.u32.u64.compose %v573, %v572
  %v575 = vextract.low.u32 %v574
  %v576 = vextract.high.u32 %v574
  %v577 = vmul.u32.u64.compose %v573, %v568
  %v578 = vextract.low.u32 %v577
  %v579 = vextract.high.u32 %v577
  %v580 = vmul.u32 %v573, %v564
  %v581 = vadd.s32 %v576, %v578
  %vm582 = vc.u32 %v576, %v578
  %v583 = vadd.s32 %v579, 1
  %v584 = vsel %vm582, %v583, %v579
  %v585 = vadd.s32 %v580, %v584
  %v586 = vadd.s32 %v585, 536870912
  %v587 = vshrl.u32 %v586, 30
  %v588 = vshll.u32 %v587, 30
  %v589 = vsub.s32 %v585, %v588
  %vm590 = vcmp.lt.s32.totalorder %v589, 0
  %v591 = vsub.s32 0, %v589
  %v592 = vsel %vm590, %v591, %v589
  %v593 = vclz %v592
  %v594 = vsub.s32 %v593, 2
  %vm595 = vcmp.gt.s32.totalorder 0, %v594
  %v596 = vsel %vm595, 0, %v594
  %v597 = vsub.s32 32, %v596
  %v598 = vshll.u32 %v589, %v596
  %v599 = vshrl.u32 %v581, %v597
  %v600 = vor.u32 %v598, %v599
  %v601 = vsub.s32 4294967266, %v596
  %v602 = vadd.s32 %v601, 127
  %v603 = vshll.u32 %v602, 23
  %v604 = vor.u32 4788187, %v603
  %v605 = vand.u32 2147483647, %v604
  %v607 = vcvt.s32.f32 %v600
  %v608 = vmul.f32 %v607, %v605
  %v609 = vxor.u32 %v608, 2147483648
  %v610 = vsel %vm527, %v609, %v608
  %v611 = vsub.s32 4, %v587
  %v612 = vsel %vm527, %v611, %v587
  %v613 = vsel %vm526, %v317, %v610
  %v614 = vsel %vm526, 0, %v612
  %v615 = vcosq.f32.pop %v613
  %v616 = vsinq.f32.pop %v613
  %vm617 = vweird.f32 %v317
  %v618 = vand.u32 %v614, 3
  %vm619 = vcmp.lt.s32.totalorder %v618, 2
  %vm620 = vcmp.eq.s32.totalorder %v618, 0
  %v621 = vxor.u32 %v616, 2147483648
  %v622 = vsel %vm620, %v615, %v621
  %vm623 = vcmp.eq.s32.totalorder %v618, 2
  %v624 = vxor.u32 %v615, 2147483648
  %v625 = vsel %vm623, %v624, %v616
  %v626 = vsel %vm619, %v622, %v625
  %v627 = vsel %vm617, nan, %v626
  %v628 = vand.u32 2147483647, %v318
  %vm629 = vcmp.le.f32.partialorder %v628, 0.7853982
  %vm630 = vcmp.lt.s32.totalorder %v318, 0
  %v631 = vand.u32 %v318, 2139095040
  %v632 = vshrl.u32 %v631, 23
  %v633 = vsub.s32 %v632, 127
  %v634 = vand.u32 2147483647, %v318
  %v635 = vand.u32 %v634, 8388607
  %v636 = vor.u32 %v635, 8388608
  %v637 = vsub.s32 0, %v636
  %v638 = vadd.s32 %v633, 1
  %vm639 = vcmp.gt.s32.totalorder %v638, 0
  %v640 = vsel %vm639, %v638, 0
  %v641 = vshrl.u32 %v640, 5
  %v642 = vand.u32 %v640, 31
  %v643 = vsub.s32 32, %v642
  %v644 = vshrl.u32 683565275, %v643
  %v645 = vshll.u32 683565275, %v642
  %v646 = vshrl.u32 2475754826, %v643
  %v647 = vor.u32 %v645, %v646
  %v648 = vshll.u32 2475754826, %v642
  %v649 = vshrl.u32 2131351028, %v643
  %v650 = vor.u32 %v648, %v649
  %v651 = vshll.u32 2131351028, %v642
  %v652 = vshrl.u32 2102212464, %v643
  %v653 = vor.u32 %v651, %v652
  %v654 = vshll.u32 2102212464, %v642
  %v655 = vshrl.u32 920167782, %v643
  %v656 = vor.u32 %v654, %v655
  %v657 = vshll.u32 920167782, %v642
  %v658 = vshrl.u32 1326507024, %v643
  %v659 = vor.u32 %v657, %v658
  %vm660 = vcmp.lt.s32.totalorder %v641, 1
  %vm661 = vcmp.lt.s32.totalorder %v641, 2
  %vm662 = vcmp.lt.s32.totalorder %v641, 3
  %vm663 = vcmp.lt.s32.totalorder %v641, 4
  %v664 = vsel %vm660, %v644, %v647
  %v665 = vsel %vm663, %v653, 2102212464
  %v666 = vsel %vm662, %v650, %v665
  %v667 = vsel %vm661, %v664, %v666
  %v668 = vsel %vm660, %v647, %v650
  %v669 = vsel %vm663, %v656, 920167782
  %v670 = vsel %vm662, %v653, %v669
  %v671 = vsel %vm661, %v668, %v670
  %v672 = vsel %vm660, %v650, %v653
  %v673 = vsel %vm663, %v659, 1326507024
  %v674 = vsel %vm662, %v656, %v673
  %v675 = vsel %vm661, %v672, %v674
  %v676 = vshll.u32 %v636, 8
  %v677 = vmul.u32.u64.compose %v676, %v675
  %v678 = vextract.low.u32 %v677
  %v679 = vextract.high.u32 %v677
  %v680 = vmul.u32.u64.compose %v676, %v671
  %v681 = vextract.low.u32 %v680
  %v682 = vextract.high.u32 %v680
  %v683 = vmul.u32 %v676, %v667
  %v684 = vadd.s32 %v679, %v681
  %vm685 = vc.u32 %v679, %v681
  %v686 = vadd.s32 %v682, 1
  %v687 = vsel %vm685, %v686, %v682
  %v688 = vadd.s32 %v683, %v687
  %v689 = vadd.s32 %v688, 536870912
  %v690 = vshrl.u32 %v689, 30
  %v691 = vshll.u32 %v690, 30
  %v692 = vsub.s32 %v688, %v691
  %vm693 = vcmp.lt.s32.totalorder %v692, 0
  %v694 = vsub.s32 0, %v692
  %v695 = vsel %vm693, %v694, %v692
  %v696 = vclz %v695
  %v697 = vsub.s32 %v696, 2
  %vm698 = vcmp.gt.s32.totalorder 0, %v697
  %v699 = vsel %vm698, 0, %v697
  %v700 = vsub.s32 32, %v699
  %v701 = vshll.u32 %v692, %v699
  %v702 = vshrl.u32 %v684, %v700
  %v703 = vor.u32 %v701, %v702
  %v704 = vsub.s32 4294967266, %v699
  %v705 = vadd.s32 %v704, 127
  %v706 = vshll.u32 %v705, 23
  %v707 = vor.u32 4788187, %v706
  %v708 = vand.u32 2147483647, %v707
  %v710 = vcvt.s32.f32 %v703
  %v711 = vmul.f32 %v710, %v708
  %v712 = vxor.u32 %v711, 2147483648
  %v713 = vsel %vm630, %v712, %v711
  %v714 = vsub.s32 4, %v690
  %v715 = vsel %vm630, %v714, %v690
  %v716 = vsel %vm629, %v318, %v713
  %v717 = vsel %vm629, 0, %v715
  %v718 = vcosq.f32.pop %v716
  %v719 = vsinq.f32.pop %v716
  %vm720 = vweird.f32 %v318
  %v721 = vand.u32 %v717, 3
  %vm722 = vcmp.lt.s32.totalorder %v721, 2
  %vm723 = vcmp.eq.s32.totalorder %v721, 0
  %v724 = vxor.u32 %v719, 2147483648
  %v725 = vsel %vm723, %v718, %v724
  %vm726 = vcmp.eq.s32.totalorder %v721, 2
  %v727 = vxor.u32 %v718, 2147483648
  %v728 = vsel %vm726, %v727, %v719
  %v729 = vsel %vm722, %v725, %v728
  %v730 = vsel %vm720, nan, %v729
  %v731 = vld [vmem:[%s1] sm:$0xff]
  %v732 = vlaneseq
  %v733 = vshrl.u32 %v732, 7
  %v734 = vsub.s32 0, %v733
  %v735 = vrot.slane %v421, %v734
  %v736 = vmul.f32 %v731, %v735
  %v737 = vadd.f32 %v736, 0.0
  %v738 = vld [vmem:[%s1 + $0x8] sm:$0xff]
  %v739 = vlaneseq
  %v740 = vshrl.u32 %v739, 7
  %v741 = vsub.s32 1, %v740
  %v742 = vrot.slane %v421, %v741
  %v743 = vmul.f32 %v738, %v742
  %v744 = vadd.f32 %v737, %v743
  %v745 = vld [vmem:[%s1 + $0x10] sm:$0xff]
  %v746 = vlaneseq
  %v747 = vshrl.u32 %v746, 7
  %v748 = vsub.s32 2, %v747
  %v749 = vrot.slane %v421, %v748
  %v750 = vmul.f32 %v745, %v749
  %v751 = vadd.f32 %v744, %v750
  %v752 = vld [vmem:[%s1 + $0x18] sm:$0xff]
  %v753 = vlaneseq
  %v754 = vshrl.u32 %v753, 7
  %v755 = vsub.s32 3, %v754
  %v756 = vrot.slane %v421, %v755
  %v757 = vmul.f32 %v752, %v756
  %v758 = vadd.f32 %v751, %v757
  %v759 = vld [vmem:[%s1 + $0x20] sm:$0xff]
  %v760 = vlaneseq
  %v761 = vshrl.u32 %v760, 7
  %v762 = vsub.s32 4, %v761
  %v763 = vrot.slane %v421, %v762
  %v764 = vmul.f32 %v759, %v763
  %v765 = vadd.f32 %v758, %v764
  %v766 = vld [vmem:[%s1 + $0x28] sm:$0xff]
  %v767 = vlaneseq
  %v768 = vshrl.u32 %v767, 7
  %v769 = vsub.s32 5, %v768
  %v770 = vrot.slane %v421, %v769
  %v771 = vmul.f32 %v766, %v770
  %v772 = vadd.f32 %v765, %v771
  %v773 = vld [vmem:[%s1 + $0x30] sm:$0xff]
  %v774 = vlaneseq
  %v775 = vshrl.u32 %v774, 7
  %v776 = vsub.s32 6, %v775
  %v777 = vrot.slane %v421, %v776
  %v778 = vmul.f32 %v773, %v777
  %v779 = vadd.f32 %v772, %v778
  %v780 = vld [vmem:[%s1 + $0x38] sm:$0xff]
  %v781 = vlaneseq
  %v782 = vshrl.u32 %v781, 7
  %v783 = vsub.s32 7, %v782
  %v784 = vrot.slane %v421, %v783
  %v785 = vmul.f32 %v780, %v784
  %v786 = vadd.f32 %v779, %v785
  %v787 = vld [vmem:[%s1 + $0x40] sm:$0xff]
  %v788 = vlaneseq
  %v789 = vshrl.u32 %v788, 7
  %v790 = vsub.s32 0, %v789
  %v791 = vrot.slane %v524, %v790
  %v792 = vmul.f32 %v787, %v791
  %v793 = vadd.f32 %v786, %v792
  %v794 = vld [vmem:[%s1 + $0x48] sm:$0xff]
  %v795 = vlaneseq
  %v796 = vshrl.u32 %v795, 7
  %v797 = vsub.s32 1, %v796
  %v798 = vrot.slane %v524, %v797
  %v799 = vmul.f32 %v794, %v798
  %v800 = vadd.f32 %v793, %v799
  %v801 = vld [vmem:[%s1 + $0x50] sm:$0xff]
  %v802 = vlaneseq
  %v803 = vshrl.u32 %v802, 7
  %v804 = vsub.s32 2, %v803
  %v805 = vrot.slane %v524, %v804
  %v806 = vmul.f32 %v801, %v805
  %v807 = vadd.f32 %v800, %v806
  %v808 = vld [vmem:[%s1 + $0x58] sm:$0xff]
  %v809 = vlaneseq
  %v810 = vshrl.u32 %v809, 7
  %v811 = vsub.s32 3, %v810
  %v812 = vrot.slane %v524, %v811
  %v813 = vmul.f32 %v808, %v812
  %v814 = vadd.f32 %v807, %v813
  %v815 = vld [vmem:[%s1 + $0x60] sm:$0xff]
  %v816 = vlaneseq
  %v817 = vshrl.u32 %v816, 7
  %v818 = vsub.s32 4, %v817
  %v819 = vrot.slane %v524, %v818
  %v820 = vmul.f32 %v815, %v819
  %v821 = vadd.f32 %v814, %v820
  %v822 = vld [vmem:[%s1 + $0x68] sm:$0xff]
  %v823 = vlaneseq
  %v824 = vshrl.u32 %v823, 7
  %v825 = vsub.s32 5, %v824
  %v826 = vrot.slane %v524, %v825
  %v827 = vmul.f32 %v822, %v826
  %v828 = vadd.f32 %v821, %v827
  %v829 = vld [vmem:[%s1 + $0x70] sm:$0xff]
  %v830 = vlaneseq
  %v831 = vshrl.u32 %v830, 7
  %v832 = vsub.s32 6, %v831
  %v833 = vrot.slane %v524, %v832
  %v834 = vmul.f32 %v829, %v833
  %v835 = vadd.f32 %v828, %v834
  %v836 = vld [vmem:[%s1 + $0x78] sm:$0xff]
  %v837 = vlaneseq
  %v838 = vshrl.u32 %v837, 7
  %v839 = vsub.s32 7, %v838
  %v840 = vrot.slane %v524, %v839
  %v841 = vmul.f32 %v836, %v840
  %v842 = vadd.f32 %v835, %v841
  %v843 = vld [vmem:[%s1 + $0x80] sm:$0xff]
  %v844 = vlaneseq
  %v845 = vshrl.u32 %v844, 7
  %v846 = vsub.s32 0, %v845
  %v847 = vrot.slane %v627, %v846
  %v848 = vmul.f32 %v843, %v847
  %v849 = vadd.f32 %v842, %v848
  %v850 = vld [vmem:[%s1 + $0x88] sm:$0xff]
  %v851 = vlaneseq
  %v852 = vshrl.u32 %v851, 7
  %v853 = vsub.s32 1, %v852
  %v854 = vrot.slane %v627, %v853
  %v855 = vmul.f32 %v850, %v854
  %v856 = vadd.f32 %v849, %v855
  %v857 = vld [vmem:[%s1 + $0x90] sm:$0xff]
  %v858 = vlaneseq
  %v859 = vshrl.u32 %v858, 7
  %v860 = vsub.s32 2, %v859
  %v861 = vrot.slane %v627, %v860
  %v862 = vmul.f32 %v857, %v861
  %v863 = vadd.f32 %v856, %v862
  %v864 = vld [vmem:[%s1 + $0x98] sm:$0xff]
  %v865 = vlaneseq
  %v866 = vshrl.u32 %v865, 7
  %v867 = vsub.s32 3, %v866
  %v868 = vrot.slane %v627, %v867
  %v869 = vmul.f32 %v864, %v868
  %v870 = vadd.f32 %v863, %v869
  %v871 = vld [vmem:[%s1 + $0xa0] sm:$0xff]
  %v872 = vlaneseq
  %v873 = vshrl.u32 %v872, 7
  %v874 = vsub.s32 4, %v873
  %v875 = vrot.slane %v627, %v874
  %v876 = vmul.f32 %v871, %v875
  %v877 = vadd.f32 %v870, %v876
  %v878 = vld [vmem:[%s1 + $0xa8] sm:$0xff]
  %v879 = vlaneseq
  %v880 = vshrl.u32 %v879, 7
  %v881 = vsub.s32 5, %v880
  %v882 = vrot.slane %v627, %v881
  %v883 = vmul.f32 %v878, %v882
  %v884 = vadd.f32 %v877, %v883
  %v885 = vld [vmem:[%s1 + $0xb0] sm:$0xff]
  %v886 = vlaneseq
  %v887 = vshrl.u32 %v886, 7
  %v888 = vsub.s32 6, %v887
  %v889 = vrot.slane %v627, %v888
  %v890 = vmul.f32 %v885, %v889
  %v891 = vadd.f32 %v884, %v890
  %v892 = vld [vmem:[%s1 + $0xb8] sm:$0xff]
  %v893 = vlaneseq
  %v894 = vshrl.u32 %v893, 7
  %v895 = vsub.s32 7, %v894
  %v896 = vrot.slane %v627, %v895
  %v897 = vmul.f32 %v892, %v896
  %v898 = vadd.f32 %v891, %v897
  %v899 = vld [vmem:[%s1 + $0xc0] sm:$0xff]
  %v900 = vlaneseq
  %v901 = vshrl.u32 %v900, 7
  %v902 = vsub.s32 0, %v901
  %v903 = vrot.slane %v730, %v902
  %v904 = vmul.f32 %v899, %v903
  %v905 = vadd.f32 %v898, %v904
  %906 = vst [vmem:[%s2] sm:$0xff] %v905
  // Predicated region
  $region10: #{f_fun_forward.1} parent=0 // pred_check
    _
  $region11: #{f_fun_forward.1} parent=0 // pred_check_branch
    %908 = sbr.rel (0) target = $region13
  $region12: #{f_fun_forward.1} parent=0 // pred_region
    _
  $region13: #{f_fun_forward.1} parent=0 // pred_fallthru
    _
  // Predicated region
  $region14: #{f_fun_forward.1} parent=0 // pred_check
    _
  $region15: #{f_fun_forward.1} parent=0 // pred_check_branch
    %910 = sbr.rel (0) target = $region17
  $region16: #{f_fun_forward.1} parent=0 // pred_region
    _
  $region17: #{f_fun_forward.1} parent=0 // pred_fallthru
    _

</llo_original>
